<compile_context>
chip_gen: v7x
topology: tpu7x:2x2x1
jax: 0.10.0
libtpu: 0.0.40
codegen_flags: <defaults>
</compile_context>

<pallas_src>
import functools

import jax
import jax.numpy as jnp
from jax.experimental import pallas as pl
from jax.experimental.pallas import tpu as pltpu

# Static integer exponents for the Polynomial monomials:
#   zeta += const_j * x**pow_j0 * y**pow_j1
POLY_POWS = ((2, 0), (0, 2), (1, 1))


def _poly_term(x, y, px, py):
    """x**px * y**py for small static non-negative integer powers.

    Returns None for the constant monomial (px == py == 0) so the caller can
    skip the broadcast-ones multiply entirely.
    """
    term = None
    for v, p in ((x, px), (y, py)):
        if p <= 0:
            continue
        f = v
        for _ in range(p - 1):
            f = f * v
        term = f if term is None else term * f
    return term


def _surface_kernel(poly_const_ref, gauss_ref, xy_ref, o_ref, *,
                    n_gauss, poly_pows):
    # xy_ref: (2, TR, LANE) VMEM tile -> x / y are full (8,128)-aligned slabs.
    x = xy_ref[0]
    y = xy_ref[1]

    acc = None

    def _add(a, v):
        return v if a is None else a + v

    # --- Polynomial part: sum_j c_j * x^{p_j0} * y^{p_j1} (static, unrolled) ---
    for j, (px, py) in enumerate(poly_pows):
        c = poly_const_ref[j]
        term = _poly_term(x, y, px, py)
        acc = _add(acc, c if term is None else c * term)

    # --- Gaussian part. gauss_ref is flat 1-D SMEM, 6 scalars per Gaussian:
    #       [const, mean_x, mean_y, -a, -(b+c), -d]   for cov [[a, b], [c, d]]
    # so zneg = -(dp^T C dp) needs no per-element negate. Padded (zero) points
    # produce a finite exp() and are trimmed in the wrapper.
    for k in range(n_gauss):
        o = 6 * k
        dx = x - gauss_ref[o + 1]
        dy = y - gauss_ref[o + 2]
        zneg = (gauss_ref[o + 3] * dx * dx
                + gauss_ref[o + 4] * dx * dy
                + gauss_ref[o + 5] * dy * dy)
        acc = _add(acc, gauss_ref[o + 0] * jnp.exp(zneg))

    if acc is None:
        acc = jnp.zeros_like(x)
    o_ref[...] = acc


def surface_map(plane_points, poly_const, gauss_const, gauss_mean, gauss_cov,
                *, poly_pows=POLY_POWS, lane=1024, max_tile_rows=256):
    """Pallas SurfaceMap forward. plane_points: (N, 2) or (B, N, 2) float32."""
    squeeze = plane_points.ndim == 2
    if squeeze:
        plane_points = plane_points[None]
    B, N, _ = plane_points.shape
    T = B * N

    # ---- Lane-dense, (8,128)-aligned tiling over the flattened point axis ----
    groups = pl.cdiv(T, 8 * lane)          # number of (8, lane) row-groups needed
    # Large blocks for the mem-bound regime, but keep >=2 grid steps when there
    # is enough data so both v7x TensorCores are fed (single-TC chips unaffected).
    tile_groups = max(1, min(max_tile_rows // 8, pl.cdiv(groups, 2)))
    tile_rows = 8 * tile_groups
    n_steps = pl.cdiv(groups, tile_groups)
    R = n_steps * tile_rows
    Tp = R * lane

    # ---- Single fused pad + de-interleave pass: (B, N, 2) -> (2, R, lane) ----
    flat = plane_points.reshape(T, 2).astype(jnp.float32)
    if Tp != T:
        flat = jnp.pad(flat, ((0, Tp - T), (0, 0)))   # zero-pad; trimmed below
    xy = flat.T.reshape(2, R, lane)

    # ---- Flat 1-D scalar params (avoids 2-D SMEM padding) ----
    poly_const = jnp.asarray(poly_const, dtype=jnp.float32).reshape(-1)
    assert len(poly_pows) == poly_const.shape[0]
    n_poly = int(poly_const.shape[0])
    if n_poly == 0:
        poly_const = jnp.zeros((1,), jnp.float32)     # keep SMEM input non-empty

    n_gauss = int(gauss_const.shape[0])
    if n_gauss > 0:
        a = gauss_cov[:, 0, 0]
        bc = gauss_cov[:, 0, 1] + gauss_cov[:, 1, 0]
        d = gauss_cov[:, 1, 1]
        gauss_params = jnp.stack(
            [gauss_const, gauss_mean[:, 0], gauss_mean[:, 1], -a, -bc, -d],
            axis=1).reshape(-1).astype(jnp.float32)
    else:
        gauss_params = jnp.zeros((6,), jnp.float32)

    kernel = functools.partial(_surface_kernel, n_gauss=n_gauss,
                               poly_pows=tuple(poly_pows))
    smem_spec = pl.BlockSpec(memory_space=pltpu.SMEM)

    flops_per_pt = 4 * len(poly_pows) + 11 * n_gauss
    cost = pl.CostEstimate(flops=flops_per_pt * Tp,
                           transcendentals=n_gauss * Tp,
                           bytes_accessed=(2 * Tp + Tp) * 4)

    out = pl.pallas_call(
        kernel,
        out_shape=jax.ShapeDtypeStruct((R, lane), jnp.float32),
        grid=(n_steps,),
        in_specs=[
            smem_spec,                                              # poly consts
            smem_spec,                                              # gauss params
            pl.BlockSpec((2, tile_rows, lane), lambda i: (0, i, 0)),  # xy slab
        ],
        out_specs=pl.BlockSpec((tile_rows, lane), lambda i: (i, 0)),
        compiler_params=pltpu.CompilerParams(
            dimension_semantics=("parallel",)),
        cost_estimate=cost,
    )(poly_const, gauss_params, xy)

    out = out.reshape(-1)[:T].reshape(B, N)
    if squeeze:
        out = out[0]
    return out


def surface_map_ref(plane_points, poly_const, gauss_const, gauss_mean, gauss_cov):
    """Pure-JAX reference matching the torch module semantics."""
    x = plane_points[..., 0]
    y = plane_points[..., 1]
    acc = jnp.zeros_like(x)
    for j, (px, py) in enumerate(POLY_POWS):
        acc = acc + poly_const[j] * (x ** px) * (y ** py)
    for k in range(gauss_const.shape[0]):
        dx = x - gauss_mean[k, 0]
        dy = y - gauss_mean[k, 1]
        zeta = (dx * (gauss_cov[k, 0, 0] * dx + gauss_cov[k, 0, 1] * dy)
                + dy * (gauss_cov[k, 1, 0] * dx + gauss_cov[k, 1, 1] * dy))
        acc = acc + gauss_const[k] * jnp.exp(-zeta)
    return acc


if __name__ == "__main__":
    # Deterministic synthetic parameters (shapes match the module's __init__).
    poly_const = jnp.array([1.0, -0.5, 0.25], dtype=jnp.float32)          # (3,)
    gauss_const = jnp.array([0.7, -1.3], dtype=jnp.float32)               # (2,)
    gauss_mean = jnp.array([[0.5, -0.3],
                            [-0.2, 0.4]], dtype=jnp.float32)              # (2, 2)
    gauss_cov = jnp.array([[[1.0, 0.2], [0.1, 0.8]],
                           [[0.5, -0.1], [0.0, 1.2]]], dtype=jnp.float32)  # (2,2,2)

    key = jax.random.PRNGKey(0)
    plane_points = jax.random.normal(key, (2, 256, 2), dtype=jnp.float32)  # (B,N,2)

    out = surface_map(plane_points, poly_const, gauss_const, gauss_mean, gauss_cov)
    out = jax.block_until_ready(out)

    ref = surface_map_ref(plane_points, poly_const, gauss_const, gauss_mean,
                          gauss_cov)
    assert out.shape == (2, 256)
    assert jnp.allclose(out, ref, atol=1e-5, rtol=1e-5)

    # Also exercise the 2-D input path (matches torch len(shape) == 2 branch).
    out2d = surface_map(plane_points[0], poly_const, gauss_const, gauss_mean,
                        gauss_cov)
    out2d = jax.block_until_ready(out2d)
    assert out2d.shape == (256,)
    assert jnp.allclose(out2d, ref[0], atol=1e-5, rtol=1e-5)

    print("KERNEL_OK")
</pallas_src>

<mosaic_0001>
module attributes {stable_mosaic.version = 11 : i64} {
  func.func @_surface_kernel(%arg0: i32, %arg1: memref<3xf32, #tpu.memory_space<smem>>, %arg2: memref<12xf32, #tpu.memory_space<smem>>, %arg3: memref<2x8x1024xf32, #tpu.memory_space<vmem>>, %arg4: memref<8x1024xf32, #tpu.memory_space<vmem>>) attributes {dimension_semantics = [#tpu.dimension_semantics<parallel>], iteration_bounds = array<i64: 1>, scalar_prefetch = 0 : i64, scratch_operands = 0 : i64, tpu.core_type = #tpu.core_type<tc>, window_params = [{transform_indices = @transform_0, window_bounds = array<i64: 3>}, {transform_indices = @transform_1, window_bounds = array<i64: 12>}, {transform_indices = @transform_2, window_bounds = array<i64: 2, 8, 1024>}, {transform_indices = @transform_3, window_bounds = array<i64: 8, 1024>}]} {
    %c0 = arith.constant 0 : index
    %c0_0 = arith.constant 0 : index
    %c0_1 = arith.constant 0 : index
    %0 = vector.load %arg3[%c0, %c0_0, %c0_1] : memref<2x8x1024xf32, #tpu.memory_space<vmem>>, vector<1x8x1024xf32>
    %1 = vector.shape_cast %0 : vector<1x8x1024xf32> to vector<8x1024xf32>
    %c1 = arith.constant 1 : index
    %c0_2 = arith.constant 0 : index
    %c0_3 = arith.constant 0 : index
    %2 = vector.load %arg3[%c1, %c0_2, %c0_3] : memref<2x8x1024xf32, #tpu.memory_space<vmem>>, vector<1x8x1024xf32>
    %3 = vector.shape_cast %2 : vector<1x8x1024xf32> to vector<8x1024xf32>
    %c0_4 = arith.constant 0 : index
    %4 = memref.load %arg1[%c0_4] : memref<3xf32, #tpu.memory_space<smem>>
    %5 = arith.mulf %1, %1 : vector<8x1024xf32>
    %6 = vector.broadcast %4 : f32 to vector<8x1024xf32>
    %7 = arith.mulf %6, %5 : vector<8x1024xf32>
    %c1_5 = arith.constant 1 : index
    %8 = memref.load %arg1[%c1_5] : memref<3xf32, #tpu.memory_space<smem>>
    %9 = arith.mulf %3, %3 : vector<8x1024xf32>
    %10 = vector.broadcast %8 : f32 to vector<8x1024xf32>
    %11 = arith.mulf %10, %9 : vector<8x1024xf32>
    %12 = arith.addf %7, %11 : vector<8x1024xf32>
    %c2 = arith.constant 2 : index
    %13 = memref.load %arg1[%c2] : memref<3xf32, #tpu.memory_space<smem>>
    %14 = arith.mulf %1, %3 : vector<8x1024xf32>
    %15 = vector.broadcast %13 : f32 to vector<8x1024xf32>
    %16 = arith.mulf %15, %14 : vector<8x1024xf32>
    %17 = arith.addf %12, %16 : vector<8x1024xf32>
    %c1_6 = arith.constant 1 : index
    %18 = memref.load %arg2[%c1_6] : memref<12xf32, #tpu.memory_space<smem>>
    %19 = vector.broadcast %18 : f32 to vector<8x1024xf32>
    %20 = arith.subf %1, %19 : vector<8x1024xf32>
    %c2_7 = arith.constant 2 : index
    %21 = memref.load %arg2[%c2_7] : memref<12xf32, #tpu.memory_space<smem>>
    %22 = vector.broadcast %21 : f32 to vector<8x1024xf32>
    %23 = arith.subf %3, %22 : vector<8x1024xf32>
    %c3 = arith.constant 3 : index
    %24 = memref.load %arg2[%c3] : memref<12xf32, #tpu.memory_space<smem>>
    %25 = vector.broadcast %24 : f32 to vector<8x1024xf32>
    %26 = arith.mulf %25, %20 : vector<8x1024xf32>
    %27 = arith.mulf %26, %20 : vector<8x1024xf32>
    %c4 = arith.constant 4 : index
    %28 = memref.load %arg2[%c4] : memref<12xf32, #tpu.memory_space<smem>>
    %29 = vector.broadcast %28 : f32 to vector<8x1024xf32>
    %30 = arith.mulf %29, %20 : vector<8x1024xf32>
    %31 = arith.mulf %30, %23 : vector<8x1024xf32>
    %32 = arith.addf %27, %31 : vector<8x1024xf32>
    %c5 = arith.constant 5 : index
    %33 = memref.load %arg2[%c5] : memref<12xf32, #tpu.memory_space<smem>>
    %34 = vector.broadcast %33 : f32 to vector<8x1024xf32>
    %35 = arith.mulf %34, %23 : vector<8x1024xf32>
    %36 = arith.mulf %35, %23 : vector<8x1024xf32>
    %37 = arith.addf %32, %36 : vector<8x1024xf32>
    %c0_8 = arith.constant 0 : index
    %38 = memref.load %arg2[%c0_8] : memref<12xf32, #tpu.memory_space<smem>>
    %39 = math.exp %37 : vector<8x1024xf32>
    %40 = vector.broadcast %38 : f32 to vector<8x1024xf32>
    %41 = arith.mulf %40, %39 : vector<8x1024xf32>
    %42 = arith.addf %17, %41 : vector<8x1024xf32>
    %c7 = arith.constant 7 : index
    %43 = memref.load %arg2[%c7] : memref<12xf32, #tpu.memory_space<smem>>
    %44 = vector.broadcast %43 : f32 to vector<8x1024xf32>
    %45 = arith.subf %1, %44 : vector<8x1024xf32>
    %c8 = arith.constant 8 : index
    %46 = memref.load %arg2[%c8] : memref<12xf32, #tpu.memory_space<smem>>
    %47 = vector.broadcast %46 : f32 to vector<8x1024xf32>
    %48 = arith.subf %3, %47 : vector<8x1024xf32>
    %c9 = arith.constant 9 : index
    %49 = memref.load %arg2[%c9] : memref<12xf32, #tpu.memory_space<smem>>
    %50 = vector.broadcast %49 : f32 to vector<8x1024xf32>
    %51 = arith.mulf %50, %45 : vector<8x1024xf32>
    %52 = arith.mulf %51, %45 : vector<8x1024xf32>
    %c10 = arith.constant 10 : index
    %53 = memref.load %arg2[%c10] : memref<12xf32, #tpu.memory_space<smem>>
    %54 = vector.broadcast %53 : f32 to vector<8x1024xf32>
    %55 = arith.mulf %54, %45 : vector<8x1024xf32>
    %56 = arith.mulf %55, %48 : vector<8x1024xf32>
    %57 = arith.addf %52, %56 : vector<8x1024xf32>
    %c11 = arith.constant 11 : index
    %58 = memref.load %arg2[%c11] : memref<12xf32, #tpu.memory_space<smem>>
    %59 = vector.broadcast %58 : f32 to vector<8x1024xf32>
    %60 = arith.mulf %59, %48 : vector<8x1024xf32>
    %61 = arith.mulf %60, %48 : vector<8x1024xf32>
    %62 = arith.addf %57, %61 : vector<8x1024xf32>
    %c6 = arith.constant 6 : index
    %63 = memref.load %arg2[%c6] : memref<12xf32, #tpu.memory_space<smem>>
    %64 = math.exp %62 : vector<8x1024xf32>
    %65 = vector.broadcast %63 : f32 to vector<8x1024xf32>
    %66 = arith.mulf %65, %64 : vector<8x1024xf32>
    %67 = arith.addf %42, %66 : vector<8x1024xf32>
    %c0_9 = arith.constant 0 : index
    %c0_10 = arith.constant 0 : index
    %68 = vector.load %arg4[%c0_9, %c0_10] : memref<8x1024xf32, #tpu.memory_space<vmem>>, vector<8x1024xf32>
    tpu.vector_store %arg4[%c0_9, %c0_10], %67 {strides = array<i32>} : memref<8x1024xf32, #tpu.memory_space<vmem>>, vector<8x1024xf32>,
    return
  }
  func.func @transform_0(%arg0: i32) -> i32 {
    %c0_i32 = arith.constant 0 : i32
    %c0_i32_0 = arith.constant 0 : i32
    return %c0_i32 : i32
  }
  func.func @transform_1(%arg0: i32) -> i32 {
    %c0_i32 = arith.constant 0 : i32
    %c0_i32_0 = arith.constant 0 : i32
    return %c0_i32 : i32
  }
  func.func @transform_2(%arg0: i32) -> (i32, i32, i32) {
    %c0_i32 = arith.constant 0 : i32
    %c0_i32_0 = arith.constant 0 : i32
    %c0_i32_1 = arith.constant 0 : i32
    return %c0_i32, %arg0, %c0_i32_0 : i32, i32, i32
  }
  func.func @transform_3(%arg0: i32) -> (i32, i32) {
    %c0_i32 = arith.constant 0 : i32
    %c0_i32_0 = arith.constant 0 : i32
    return %arg0, %c0_i32 : i32, i32
  }
}

</mosaic_0001>

<llo_original>
// kernel: tpu_custom_call.1
$region0: #{tpu_custom_call.1}
  #allocation0 [shape = 'u32[]', space=smem, size = 0x4, offset = 0x4, fixed_abs, tag = 'smem constant byte address 0x4 - core index']
  #allocation1 [shape = 'u32[144,128]{1,0:T(1,128)}', space=vmem, size = 0x12000, scoped, tag = 'internal scratch']
  %s0 = inlined_call_operand.hbm [shape: f32[3], index: 0, kind: input, shape index: {}]
  %s1 = inlined_call_operand.vmem [shape: f32[12], index: 1, kind: input, shape index: {}]
  %s2 = inlined_call_operand.hbm [shape: f32[2,8,1024], index: 2, kind: input, shape index: {}]
  %s3 = inlined_call_operand.hbm [shape: f32[8,1024], index: 3, kind: output, shape index: {}]
  %s4 = sld [smem:[#allocation0]]
  $region34: #{tpu_custom_call.1} parent=0
    _
  %s6 = ssub.s32 1, %s4
  %s7 = scalar_select 0, %s6, %s4
  $region1: #{tpu_custom_call.1} parent=0
    #allocation2 [shape = 'u8[512]{0}', space=smem, size = 0x200, scoped, tag = 'input window, operand 0, single buffered']
    #allocation3 [shape = 's32[1]{0}', space=sflag, size = 0x4, scoped, tag = 'scoped memory for tpu_custom_call.1']
    #allocation4 [shape = 's32[1]{0}', space=sflag, size = 0x4, scoped, tag = 'scoped memory for tpu_custom_call.1']
    #allocation5 [shape = 's32[1]{0}', space=sflag, size = 0x4, scoped, tag = 'scoped memory for tpu_custom_call.1']
    #allocation6 [shape = 's32[1]{0}', space=sflag, size = 0x4, scoped, tag = 'scoped memory for tpu_custom_call.1']
    #allocation7 [shape = 'u8[512]{0}', space=smem, size = 0x200, scoped, tag = 'input window, operand 1, single buffered']
    #allocation8 [shape = 'u8[65536]{0}', space=vmem, size = 0x10000, scoped, tag = 'input window, operand 2, single buffered']
    #allocation9 [shape = 'u8[32768]{0}', space=vmem, size = 0x8000, scoped, tag = 'output window, operand 0, single buffered']
    %8 = vsyncpa [#allocation5], 0
    %9 = vsyncpa [#allocation6], 0
    %10 = vsyncpa [#allocation3], 0
    %11 = vsyncpa [#allocation4], 0
    // Predicated region
    $region2: #{tpu_custom_call.1} parent=1 // pred_check
      _
    $region3: #{tpu_custom_call.1} parent=1 // pred_check_branch
      %13 = sbr.rel (0) target = $region5
    $region4: #{tpu_custom_call.1} parent=1 // pred_region
      %s15 = ssub.s32 16, 16
      %16 = vsyncadd [#allocation5], %s15
      %19 = dma.hbm_to_smem %s0, 16, [#allocation2], [#allocation5]
    $region5: #{tpu_custom_call.1} parent=1 // pred_fallthru
      _
    // Predicated region
    $region6: #{tpu_custom_call.1} parent=1 // pred_check
      _
    $region7: #{tpu_custom_call.1} parent=1 // pred_check_branch
      %21 = sbr.rel (0) target = $region9
    $region8: #{tpu_custom_call.1} parent=1 // pred_region
      %s23 = ssub.s32 16, 16
      %24 = vsyncadd [#allocation6], %s23
      %s26 = sshll.u32 %s1, 4
      %s27 = int_to_ptr.vmem [resolvable:$true] %s26
      %29 = dma.vmem_to_smem %s27, 16, [#allocation7], [#allocation6]
    $region9: #{tpu_custom_call.1} parent=1 // pred_fallthru
      _
    // Predicated region
    $region10: #{tpu_custom_call.1} parent=1 // pred_check
      _
    $region11: #{tpu_custom_call.1} parent=1 // pred_check_branch
      %31 = sbr.rel (0) target = $region13
    $region12: #{tpu_custom_call.1} parent=1 // pred_region
      %s33 = ssub.s32 2048, 2048
      %34 = vsyncadd [#allocation3], %s33
      %s35 = sshll.u32 [#allocation8], 4
      %s36 = int_to_ptr.vmem [resolvable:$true] %s35
      %41 = dma.hbm_to_vmem [thread:$0]  %s2, 2048, %s36, [#allocation3], 1024, 1024, 64
    $region13: #{tpu_custom_call.1} parent=1 // pred_fallthru
      _
    // Predicated region
    $region14: #{tpu_custom_call.1} parent=1 // pred_check
      _
    $region15: #{tpu_custom_call.1} parent=1 // pred_check_branch
      %43 = sbr.rel (0) target = $region17
    $region16: #{tpu_custom_call.1} parent=1 // pred_region
      %44 = dma.done [#allocation5], 16
    $region17: #{tpu_custom_call.1} parent=1 // pred_fallthru
      _
    // Predicated region
    $region18: #{tpu_custom_call.1} parent=1 // pred_check
      _
    $region19: #{tpu_custom_call.1} parent=1 // pred_check_branch
      %46 = sbr.rel (0) target = $region21
    $region20: #{tpu_custom_call.1} parent=1 // pred_region
      %47 = dma.done [#allocation6], 16
    $region21: #{tpu_custom_call.1} parent=1 // pred_fallthru
      _
    // Predicated region
    $region22: #{tpu_custom_call.1} parent=1 // pred_check
      _
    $region23: #{tpu_custom_call.1} parent=1 // pred_check_branch
      %49 = sbr.rel (0) target = $region25
    $region24: #{tpu_custom_call.1} parent=1 // pred_region
      %50 = dma.done [#allocation3], 2048
    $region25: #{tpu_custom_call.1} parent=1 // pred_fallthru
      _
    %51 = sfence
    %v52 = vld [vmem:[#allocation8] sm:$0xff]
    %v53 = vld [vmem:[#allocation8 + $0x8] sm:$0xff]
    %v54 = vld [vmem:[#allocation8 + $0x10] sm:$0xff]
    %v55 = vld [vmem:[#allocation8 + $0x18] sm:$0xff]
    %v56 = vld [vmem:[#allocation8 + $0x20] sm:$0xff]
    %v57 = vld [vmem:[#allocation8 + $0x28] sm:$0xff]
    %v58 = vld [vmem:[#allocation8 + $0x30] sm:$0xff]
    %v59 = vld [vmem:[#allocation8 + $0x38] sm:$0xff]
    %s60 = scalar_lea.vmem [#allocation8], 64
    %v61 = vld [vmem:[%s60] sm:$0xff]
    %v62 = vld [vmem:[%s60 + $0x8] sm:$0xff]
    %v63 = vld [vmem:[%s60 + $0x10] sm:$0xff]
    %v64 = vld [vmem:[%s60 + $0x18] sm:$0xff]
    %v65 = vld [vmem:[%s60 + $0x20] sm:$0xff]
    %v66 = vld [vmem:[%s60 + $0x28] sm:$0xff]
    %v67 = vld [vmem:[%s60 + $0x30] sm:$0xff]
    %v68 = vld [vmem:[%s60 + $0x38] sm:$0xff]
    %s69 = sld [smem:[#allocation2]]
    %v70 = vmul.f32 %v52, %v52
    %v71 = vmul.f32 %v53, %v53
    %v72 = vmul.f32 %v54, %v54
    %v73 = vmul.f32 %v55, %v55
    %v74 = vmul.f32 %v56, %v56
    %v75 = vmul.f32 %v57, %v57
    %v76 = vmul.f32 %v58, %v58
    %v77 = vmul.f32 %v59, %v59
    %v78 = vstv %s69
    %v79 = vmul.f32 %v78, %v70
    %v80 = vmul.f32 %v78, %v71
    %v81 = vmul.f32 %v78, %v72
    %v82 = vmul.f32 %v78, %v73
    %v83 = vmul.f32 %v78, %v74
    %v84 = vmul.f32 %v78, %v75
    %v85 = vmul.f32 %v78, %v76
    %v86 = vmul.f32 %v78, %v77
    %s87 = sld [smem:[#allocation2 + $0x1]]
    %v88 = vmul.f32 %v61, %v61
    %v89 = vmul.f32 %v62, %v62
    %v90 = vmul.f32 %v63, %v63
    %v91 = vmul.f32 %v64, %v64
    %v92 = vmul.f32 %v65, %v65
    %v93 = vmul.f32 %v66, %v66
    %v94 = vmul.f32 %v67, %v67
    %v95 = vmul.f32 %v68, %v68
    %v96 = vstv %s87
    %v97 = vmul.f32 %v96, %v88
    %v98 = vmul.f32 %v96, %v89
    %v99 = vmul.f32 %v96, %v90
    %v100 = vmul.f32 %v96, %v91
    %v101 = vmul.f32 %v96, %v92
    %v102 = vmul.f32 %v96, %v93
    %v103 = vmul.f32 %v96, %v94
    %v104 = vmul.f32 %v96, %v95
    %v105 = vadd.f32 %v79, %v97
    %v106 = vadd.f32 %v80, %v98
    %v107 = vadd.f32 %v81, %v99
    %v108 = vadd.f32 %v82, %v100
    %v109 = vadd.f32 %v83, %v101
    %v110 = vadd.f32 %v84, %v102
    %v111 = vadd.f32 %v85, %v103
    %v112 = vadd.f32 %v86, %v104
    %s113 = sld [smem:[#allocation2 + $0x2]]
    %v114 = vmul.f32 %v52, %v61
    %v115 = vmul.f32 %v53, %v62
    %v116 = vmul.f32 %v54, %v63
    %v117 = vmul.f32 %v55, %v64
    %v118 = vmul.f32 %v56, %v65
    %v119 = vmul.f32 %v57, %v66
    %v120 = vmul.f32 %v58, %v67
    %v121 = vmul.f32 %v59, %v68
    %v122 = vstv %s113
    %v123 = vmul.f32 %v122, %v114
    %v124 = vmul.f32 %v122, %v115
    %v125 = vmul.f32 %v122, %v116
    %v126 = vmul.f32 %v122, %v117
    %v127 = vmul.f32 %v122, %v118
    %v128 = vmul.f32 %v122, %v119
    %v129 = vmul.f32 %v122, %v120
    %v130 = vmul.f32 %v122, %v121
    %v131 = vadd.f32 %v105, %v123
    %v132 = vadd.f32 %v106, %v124
    %v133 = vadd.f32 %v107, %v125
    %v134 = vadd.f32 %v108, %v126
    %v135 = vadd.f32 %v109, %v127
    %v136 = vadd.f32 %v110, %v128
    %v137 = vadd.f32 %v111, %v129
    %v138 = vadd.f32 %v112, %v130
    %s139 = sld [smem:[#allocation7 + $0x1]]
    %v140 = vstv %s139
    %v141 = vsub.f32 %v52, %v140
    %v142 = vsub.f32 %v53, %v140
    %v143 = vsub.f32 %v54, %v140
    %v144 = vsub.f32 %v55, %v140
    %v145 = vsub.f32 %v56, %v140
    %v146 = vsub.f32 %v57, %v140
    %v147 = vsub.f32 %v58, %v140
    %v148 = vsub.f32 %v59, %v140
    %s149 = sld [smem:[#allocation7 + $0x2]]
    %v150 = vstv %s149
    %v151 = vsub.f32 %v61, %v150
    %v152 = vsub.f32 %v62, %v150
    %v153 = vsub.f32 %v63, %v150
    %v154 = vsub.f32 %v64, %v150
    %v155 = vsub.f32 %v65, %v150
    %v156 = vsub.f32 %v66, %v150
    %v157 = vsub.f32 %v67, %v150
    %v158 = vsub.f32 %v68, %v150
    %s159 = sld [smem:[#allocation7 + $0x3]]
    %v160 = vstv %s159
    %v161 = vmul.f32 %v160, %v141
    %v162 = vmul.f32 %v160, %v142
    %v163 = vmul.f32 %v160, %v143
    %v164 = vmul.f32 %v160, %v144
    %v165 = vmul.f32 %v160, %v145
    %v166 = vmul.f32 %v160, %v146
    %v167 = vmul.f32 %v160, %v147
    %v168 = vmul.f32 %v160, %v148
    %v169 = vmul.f32 %v161, %v141
    %v170 = vmul.f32 %v162, %v142
    %v171 = vmul.f32 %v163, %v143
    %v172 = vmul.f32 %v164, %v144
    %v173 = vmul.f32 %v165, %v145
    %v174 = vmul.f32 %v166, %v146
    %v175 = vmul.f32 %v167, %v147
    %v176 = vmul.f32 %v168, %v148
    %s177 = sld [smem:[#allocation7 + $0x4]]
    %v178 = vstv %s177
    %v179 = vmul.f32 %v178, %v141
    %v180 = vmul.f32 %v178, %v142
    %v181 = vmul.f32 %v178, %v143
    %v182 = vmul.f32 %v178, %v144
    %v183 = vmul.f32 %v178, %v145
    %v184 = vmul.f32 %v178, %v146
    %v185 = vmul.f32 %v178, %v147
    %v186 = vmul.f32 %v178, %v148
    %v187 = vmul.f32 %v179, %v151
    %v188 = vmul.f32 %v180, %v152
    %v189 = vmul.f32 %v181, %v153
    %v190 = vmul.f32 %v182, %v154
    %v191 = vmul.f32 %v183, %v155
    %v192 = vmul.f32 %v184, %v156
    %v193 = vmul.f32 %v185, %v157
    %v194 = vmul.f32 %v186, %v158
    %v195 = vadd.f32 %v169, %v187
    %v196 = vadd.f32 %v170, %v188
    %v197 = vadd.f32 %v171, %v189
    %v198 = vadd.f32 %v172, %v190
    %v199 = vadd.f32 %v173, %v191
    %v200 = vadd.f32 %v174, %v192
    %v201 = vadd.f32 %v175, %v193
    %v202 = vadd.f32 %v176, %v194
    %s203 = sld [smem:[#allocation7 + $0x5]]
    %v204 = vstv %s203
    %v205 = vmul.f32 %v204, %v151
    %v206 = vmul.f32 %v204, %v152
    %v207 = vmul.f32 %v204, %v153
    %v208 = vmul.f32 %v204, %v154
    %v209 = vmul.f32 %v204, %v155
    %v210 = vmul.f32 %v204, %v156
    %v211 = vmul.f32 %v204, %v157
    %v212 = vmul.f32 %v204, %v158
    %v213 = vmul.f32 %v205, %v151
    %v214 = vmul.f32 %v206, %v152
    %v215 = vmul.f32 %v207, %v153
    %v216 = vmul.f32 %v208, %v154
    %v217 = vmul.f32 %v209, %v155
    %v218 = vmul.f32 %v210, %v156
    %v219 = vmul.f32 %v211, %v157
    %v220 = vmul.f32 %v212, %v158
    %v221 = vadd.f32 %v195, %v213
    %v222 = vadd.f32 %v196, %v214
    %v223 = vadd.f32 %v197, %v215
    %v224 = vadd.f32 %v198, %v216
    %v225 = vadd.f32 %v199, %v217
    %v226 = vadd.f32 %v200, %v218
    %v227 = vadd.f32 %v201, %v219
    %v228 = vadd.f32 %v202, %v220
    %s229 = sld [smem:[#allocation7]]
    %v230 = vmul.f32 %v221, 1.442695
    %v231 = vpow.pop %v230
    %v232 = vmul.f32 %v222, 1.442695
    %v233 = vpow.pop %v232
    %v234 = vmul.f32 %v223, 1.442695
    %v235 = vpow.pop %v234
    %v236 = vmul.f32 %v224, 1.442695
    %v237 = vpow.pop %v236
    %v238 = vmul.f32 %v225, 1.442695
    %v239 = vpow.pop %v238
    %v240 = vmul.f32 %v226, 1.442695
    %v241 = vpow.pop %v240
    %v242 = vmul.f32 %v227, 1.442695
    %v243 = vpow.pop %v242
    %v244 = vmul.f32 %v228, 1.442695
    %v245 = vpow.pop %v244
    %v246 = vstv %s229
    %v247 = vmul.f32 %v246, %v231
    %v248 = vmul.f32 %v246, %v233
    %v249 = vmul.f32 %v246, %v235
    %v250 = vmul.f32 %v246, %v237
    %v251 = vmul.f32 %v246, %v239
    %v252 = vmul.f32 %v246, %v241
    %v253 = vmul.f32 %v246, %v243
    %v254 = vmul.f32 %v246, %v245
    %v255 = vadd.f32 %v131, %v247
    %v256 = vadd.f32 %v132, %v248
    %v257 = vadd.f32 %v133, %v249
    %v258 = vadd.f32 %v134, %v250
    %v259 = vadd.f32 %v135, %v251
    %v260 = vadd.f32 %v136, %v252
    %v261 = vadd.f32 %v137, %v253
    %v262 = vadd.f32 %v138, %v254
    %s263 = sld [smem:[#allocation7 + $0x7]]
    %v264 = vstv %s263
    %v265 = vsub.f32 %v52, %v264
    %v266 = vsub.f32 %v53, %v264
    %v267 = vsub.f32 %v54, %v264
    %v268 = vsub.f32 %v55, %v264
    %v269 = vsub.f32 %v56, %v264
    %v270 = vsub.f32 %v57, %v264
    %v271 = vsub.f32 %v58, %v264
    %v272 = vsub.f32 %v59, %v264
    %s273 = sld [smem:[#allocation7 + $0x8]]
    %v274 = vstv %s273
    %v275 = vsub.f32 %v61, %v274
    %v276 = vsub.f32 %v62, %v274
    %v277 = vsub.f32 %v63, %v274
    %v278 = vsub.f32 %v64, %v274
    %v279 = vsub.f32 %v65, %v274
    %v280 = vsub.f32 %v66, %v274
    %v281 = vsub.f32 %v67, %v274
    %v282 = vsub.f32 %v68, %v274
    %s283 = sld [smem:[#allocation7 + $0x9]]
    %v284 = vstv %s283
    %v285 = vmul.f32 %v284, %v265
    %v286 = vmul.f32 %v284, %v266
    %v287 = vmul.f32 %v284, %v267
    %v288 = vmul.f32 %v284, %v268
    %v289 = vmul.f32 %v284, %v269
    %v290 = vmul.f32 %v284, %v270
    %v291 = vmul.f32 %v284, %v271
    %v292 = vmul.f32 %v284, %v272
    %v293 = vmul.f32 %v285, %v265
    %v294 = vmul.f32 %v286, %v266
    %v295 = vmul.f32 %v287, %v267
    %v296 = vmul.f32 %v288, %v268
    %v297 = vmul.f32 %v289, %v269
    %v298 = vmul.f32 %v290, %v270
    %v299 = vmul.f32 %v291, %v271
    %v300 = vmul.f32 %v292, %v272
    %s301 = sld [smem:[#allocation7 + $0xa]]
    %v302 = vstv %s301
    %v303 = vmul.f32 %v302, %v265
    %v304 = vmul.f32 %v302, %v266
    %v305 = vmul.f32 %v302, %v267
    %v306 = vmul.f32 %v302, %v268
    %v307 = vmul.f32 %v302, %v269
    %v308 = vmul.f32 %v302, %v270
    %v309 = vmul.f32 %v302, %v271
    %v310 = vmul.f32 %v302, %v272
    %v311 = vmul.f32 %v303, %v275
    %v312 = vmul.f32 %v304, %v276
    %v313 = vmul.f32 %v305, %v277
    %v314 = vmul.f32 %v306, %v278
    %v315 = vmul.f32 %v307, %v279
    %v316 = vmul.f32 %v308, %v280
    %v317 = vmul.f32 %v309, %v281
    %v318 = vmul.f32 %v310, %v282
    %v319 = vadd.f32 %v293, %v311
    %v320 = vadd.f32 %v294, %v312
    %v321 = vadd.f32 %v295, %v313
    %v322 = vadd.f32 %v296, %v314
    %v323 = vadd.f32 %v297, %v315
    %v324 = vadd.f32 %v298, %v316
    %v325 = vadd.f32 %v299, %v317
    %v326 = vadd.f32 %v300, %v318
    %s327 = sld [smem:[#allocation7 + $0xb]]
    %v328 = vstv %s327
    %v329 = vmul.f32 %v328, %v275
    %v330 = vmul.f32 %v328, %v276
    %v331 = vmul.f32 %v328, %v277
    %v332 = vmul.f32 %v328, %v278
    %v333 = vmul.f32 %v328, %v279
    %v334 = vmul.f32 %v328, %v280
    %v335 = vmul.f32 %v328, %v281
    %v336 = vmul.f32 %v328, %v282
    %v337 = vmul.f32 %v329, %v275
    %v338 = vmul.f32 %v330, %v276
    %v339 = vmul.f32 %v331, %v277
    %v340 = vmul.f32 %v332, %v278
    %v341 = vmul.f32 %v333, %v279
    %v342 = vmul.f32 %v334, %v280
    %v343 = vmul.f32 %v335, %v281
    %v344 = vmul.f32 %v336, %v282
    %v345 = vadd.f32 %v319, %v337
    %v346 = vadd.f32 %v320, %v338
    %v347 = vadd.f32 %v321, %v339
    %v348 = vadd.f32 %v322, %v340
    %v349 = vadd.f32 %v323, %v341
    %v350 = vadd.f32 %v324, %v342
    %v351 = vadd.f32 %v325, %v343
    %v352 = vadd.f32 %v326, %v344
    %s353 = sld [smem:[#allocation7 + $0x6]]
    %v354 = vmul.f32 %v345, 1.442695
    %v355 = vpow.pop %v354
    %v356 = vmul.f32 %v346, 1.442695
    %v357 = vpow.pop %v356
    %v358 = vmul.f32 %v347, 1.442695
    %v359 = vpow.pop %v358
    %v360 = vmul.f32 %v348, 1.442695
    %v361 = vpow.pop %v360
    %v362 = vmul.f32 %v349, 1.442695
    %v363 = vpow.pop %v362
    %v364 = vmul.f32 %v350, 1.442695
    %v365 = vpow.pop %v364
    %v366 = vmul.f32 %v351, 1.442695
    %v367 = vpow.pop %v366
    %v368 = vmul.f32 %v352, 1.442695
    %v369 = vpow.pop %v368
    %v370 = vstv %s353
    %v371 = vmul.f32 %v370, %v355
    %v372 = vmul.f32 %v370, %v357
    %v373 = vmul.f32 %v370, %v359
    %v374 = vmul.f32 %v370, %v361
    %v375 = vmul.f32 %v370, %v363
    %v376 = vmul.f32 %v370, %v365
    %v377 = vmul.f32 %v370, %v367
    %v378 = vmul.f32 %v370, %v369
    %v379 = vadd.f32 %v255, %v371
    %v380 = vadd.f32 %v256, %v372
    %v381 = vadd.f32 %v257, %v373
    %v382 = vadd.f32 %v258, %v374
    %v383 = vadd.f32 %v259, %v375
    %v384 = vadd.f32 %v260, %v376
    %v385 = vadd.f32 %v261, %v377
    %v386 = vadd.f32 %v262, %v378
    %387 = vst [vmem:[#allocation9] sm:$0xff] %v379
    %388 = vst [vmem:[#allocation9 + $0x8] sm:$0xff] %v380
    %389 = vst [vmem:[#allocation9 + $0x10] sm:$0xff] %v381
    %390 = vst [vmem:[#allocation9 + $0x18] sm:$0xff] %v382
    %391 = vst [vmem:[#allocation9 + $0x20] sm:$0xff] %v383
    %392 = vst [vmem:[#allocation9 + $0x28] sm:$0xff] %v384
    %393 = vst [vmem:[#allocation9 + $0x30] sm:$0xff] %v385
    %394 = vst [vmem:[#allocation9 + $0x38] sm:$0xff] %v386
    // Predicated region
    $region26: #{tpu_custom_call.1} parent=1 // pred_check
      _
    $region27: #{tpu_custom_call.1} parent=1 // pred_check_branch
      %396 = sbr.rel (0) target = $region29
    $region28: #{tpu_custom_call.1} parent=1 // pred_region
      %s398 = ssub.s32 1024, 1024
      %399 = vsyncadd [#allocation4], %s398
      %s401 = sshll.u32 [#allocation9], 4
      %s402 = int_to_ptr.vmem [resolvable:$true] %s401
      %404 = dma.vmem_to_hbm [thread:$0]  %s402, 1024, %s3, [#allocation4]
    $region29: #{tpu_custom_call.1} parent=1 // pred_fallthru
      _
    // Predicated region
    $region30: #{tpu_custom_call.1} parent=1 // pred_check
      _
    $region31: #{tpu_custom_call.1} parent=1 // pred_check_branch
      %406 = sbr.rel (0) target = $region33
    $region32: #{tpu_custom_call.1} parent=1 // pred_region
      %407 = dma.done [#allocation4], 1024
    $region33: #{tpu_custom_call.1} parent=1 // pred_fallthru
      _
    %408 = vsyncpa [#allocation3], 1
    %409 = vsyncpa [#allocation4], 1
    %410 = vsyncpa [#allocation5], 1
    %411 = vsyncpa [#allocation6], 1

</llo_original>
